<compile_context>
chip_gen: v5e
topology: v5e:2x2
jax: 0.10.0
libtpu: 0.0.40
codegen_flags: <defaults>
</compile_context>

<pallas_src>
import functools

import jax
import jax.numpy as jnp
import numpy as np
from jax.experimental import pallas as pl
from jax.experimental.pallas import tpu as pltpu


# ----------------------------------------------------------------------------
# Fused kernel.
#   grid = (B, n_tiles) with n_tiles = cdiv(N, TN); N axis is the reduction.
#   x_ref     : (1, C_in, TN)        one N-tile of one batch element (bf16)
#   w1_ref    : (C_inner, C_in)      conv_5 weight with BN scale folded (bf16)
#   shift_ref : (C_inner, 1) f32     beta - running_mean * scale
#   w2_ref    : (C_out, C_inner) f32 lin_5 weight
#   w3_ref    : (num_classes, C_out) projection weight (f32)
#   b_ref     : (num_classes, 1) f32 projection bias
#   o_ref     : (1, num_classes, 1)  per-batch class probabilities (f32)
#   acc_ref   : (C_inner, 1) f32     running channel sum (global avg pool)
# ----------------------------------------------------------------------------
def _x3d_head_kernel(x_ref, w1_ref, shift_ref, w2_ref, w3_ref, b_ref,
                     o_ref, acc_ref, *, n_total, inv_n, ragged):
    n_idx = pl.program_id(1)
    n_tiles = pl.num_programs(1)
    last = n_idx == n_tiles - 1

    @pl.when(n_idx == 0)
    def _():
        acc_ref[...] = jnp.zeros_like(acc_ref)

    x = x_ref[0]                                                   # (C_in, TN)
    # conv_5 (1x1x1) == per-voxel matmul; N on the lane axis, f32 accumulate.
    # BN scale is pre-folded into w1, so only the per-channel shift remains.
    y = jnp.dot(w1_ref[...], x, preferred_element_type=jnp.float32)  # (C_inner, TN)
    y = y + shift_ref[...]                                         # BN shift (eval)
    y = jnp.maximum(y, 0.0)                                        # ReLU

    if not ragged:
        # N % TN == 0: every lane of every tile is valid; no masking at all.
        acc_ref[...] += jnp.sum(y, axis=1, keepdims=True)          # (C_inner, 1)
    else:
        @pl.when(n_idx < n_tiles - 1)
        def _():
            # Full tiles: fast path, no mask.
            acc_ref[...] += jnp.sum(y, axis=1, keepdims=True)

        @pl.when(last)
        def _():
            # Only the single ragged tile pays for masking. Lanes >= N hold
            # padded-block garbage after the matmul and MUST be zeroed before
            # entering the pooled sum (where() does not propagate NaN/Inf from
            # the unselected branch).
            tn = y.shape[1]
            lane = jax.lax.broadcasted_iota(jnp.int32, (1, tn), 1)
            valid = (n_idx * tn + lane) < n_total
            acc_ref[...] += jnp.sum(jnp.where(valid, y, 0.0), axis=1,
                                    keepdims=True)

    # Finalize on the last N-tile: pool -> lin_5 -> ReLU -> proj -> softmax.
    @pl.when(last)
    def _():
        pooled = acc_ref[...] * inv_n                              # (C_inner, 1)
        h = jnp.dot(w2_ref[...], pooled,
                    preferred_element_type=jnp.float32)            # (C_out, 1)
        h = jnp.maximum(h, 0.0)                                    # lin_5_relu
        logits = jnp.dot(w3_ref[...], h,
                         preferred_element_type=jnp.float32)       # (NC, 1)
        logits = logits + b_ref[...]
        m = jnp.max(logits, axis=0, keepdims=True)                 # stable softmax
        e = jnp.exp(logits - m)
        o_ref[0] = e / jnp.sum(e, axis=0, keepdims=True)


def _choose_n_tile(n, c_in, itemsize, max_tile_bytes, max_lanes=8192):
    """Lane-tile size for the N = T*H*W axis (multiple of 128, VMEM-bounded).

    Targets ~max_tile_bytes of x per block (per buffer; blocks are
    double-buffered) so the ~0.35 us per-grid-step overhead amortizes.
    """
    if n <= 128:
        return n                                 # full-dim block (lane < 128 ok)
    budget = max(128, ((max_tile_bytes // (c_in * itemsize)) // 128) * 128)
    return int(min(budget, max_lanes, pl.cdiv(n, 128) * 128))


@functools.partial(
    jax.jit,
    static_argnames=("eps", "n_tile", "compute_dtype", "max_tile_bytes",
                     "single_buffer_weights"))
def x3d_head_forward(x_ncdhw, w_conv5, bn_gamma, bn_beta, bn_mean, bn_var,
                     w_lin5, w_proj, b_proj, eps=1e-5, n_tile=None,
                     compute_dtype=jnp.bfloat16,
                     max_tile_bytes=2 * 1024 * 1024,
                     single_buffer_weights=None):
    """Eval-mode X3DHead forward. x_ncdhw: (B, C_in, T, H, W) float32."""
    B, C_in, T, H, W = x_ncdhw.shape
    N = T * H * W
    C_inner = w_conv5.shape[0]
    C_out = w_lin5.shape[0]
    num_classes = w_proj.shape[0]
    itemsize = jnp.dtype(compute_dtype).itemsize

    # Row-major collapse of (T,H,W) -> N: free metadata reshape, NO transpose.
    # x is the only large HBM stream; carry it in bf16 (halves bytes/tile,
    # bf16-native MXU). All accumulation stays f32.
    x = x_ncdhw.reshape(B, C_in, N).astype(compute_dtype)

    # Fold BatchNorm3d(eval): scale goes INTO the conv weight (exact algebraic
    # fold, computed once at trace time); only the shift stays in the kernel.
    inv_std = 1.0 / jnp.sqrt(bn_var + eps)
    scale = bn_gamma * inv_std                                     # (C_inner,)
    shift = ((bn_beta - bn_mean * bn_gamma * inv_std)
             .reshape(C_inner, 1).astype(jnp.float32))

    w1 = (w_conv5.reshape(C_inner, C_in) * scale[:, None]).astype(compute_dtype)
    w2 = w_lin5.reshape(C_out, C_inner).astype(jnp.float32)        # (C_out, C_inner)
    w3 = w_proj.astype(jnp.float32)                                # (NC, C_out)
    b3 = b_proj.reshape(num_classes, 1).astype(jnp.float32)

    tn = (_choose_n_tile(N, C_in, itemsize, max_tile_bytes)
          if n_tile is None else n_tile)
    n_tiles = pl.cdiv(N, tn)
    ragged = (N % tn) != 0

    # ---- VMEM budgeting (v5e scoped default 16 MiB, v6e/v7x 32 MiB) --------
    weight_bytes = int(w1.size * itemsize + shift.size * 4 + w2.size * 4
                       + w3.size * 4 + b3.size * 4)
    if single_buffer_weights is None:
        # At production X3D dims (lin_5 2048x432, proj 400x2048) the constant
        # weights double-buffered would burn >13 MiB for nothing; single-buffer
        # them. Small test shapes keep the proven default (double-buffered).
        single_buffer_weights = weight_bytes > 4 * 1024 * 1024
    x_block_bytes = C_in * tn * itemsize
    vmem_need = (2 * x_block_bytes
                 + (1 if single_buffer_weights else 2) * weight_bytes
                 + 2 * (C_inner + num_classes) * 4 + (1 << 20))
    vmem_limit = None
    if vmem_need > 12 * 1024 * 1024:
        vmem_limit = int(min(max(2 * vmem_need, 16 * 1024 * 1024),
                             40 * 1024 * 1024))

    def _weight_spec(shape):
        index_map = lambda b, n: (0,) * len(shape)
        if single_buffer_weights:
            # Constant-index blocks never change between grid steps; a single
            # VMEM buffer suffices. Fall back if this jax version does not
            # expose pipeline_mode on BlockSpec.
            try:
                return pl.BlockSpec(shape, index_map,
                                    pipeline_mode=pl.Buffered(1))
            except TypeError:
                pass
        return pl.BlockSpec(shape, index_map)

    kernel = functools.partial(_x3d_head_kernel, n_total=N, inv_n=1.0 / N,
                               ragged=ragged)

    out = pl.pallas_call(
        kernel,
        out_shape=jax.ShapeDtypeStruct((B, num_classes, 1), jnp.float32),
        grid=(B, n_tiles),
        in_specs=[
            pl.BlockSpec((1, C_in, tn), lambda b, n: (b, 0, n)),
            _weight_spec((C_inner, C_in)),
            _weight_spec((C_inner, 1)),
            _weight_spec((C_out, C_inner)),
            _weight_spec((num_classes, C_out)),
            _weight_spec((num_classes, 1)),
        ],
        out_specs=pl.BlockSpec((1, num_classes, 1), lambda b, n: (b, 0, 0)),
        scratch_shapes=[pltpu.VMEM((C_inner, 1), jnp.float32)],
        compiler_params=pltpu.CompilerParams(
            dimension_semantics=("parallel", "arbitrary"),
            vmem_limit_bytes=vmem_limit),
    )(x, w1, shift, w2, w3, b3)

    # mean over (T',H',W')=(1,1,1) is identity; view(B, -1).
    return out.reshape(B, num_classes)


def _reference_forward(x, w_conv5, g, b, mu, var, w_lin5, w_proj, b_proj, eps=1e-5):
    """Pure-jnp mirror of the PyTorch eval-mode forward, for verification."""
    C_inner = w_conv5.shape[0]
    C_out = w_lin5.shape[0]
    y = jnp.einsum("bcthw,oc->bothw", x, w_conv5.reshape(C_inner, -1))
    y = (y - mu[None, :, None, None, None]) / jnp.sqrt(var + eps)[None, :, None, None, None]
    y = y * g[None, :, None, None, None] + b[None, :, None, None, None]
    y = jnp.maximum(y, 0.0)
    y = jnp.mean(y, axis=(2, 3, 4))                                # (B, C_inner)
    y = y @ w_lin5.reshape(C_out, C_inner).T
    y = jnp.maximum(y, 0.0)
    logits = y @ w_proj.T + b_proj
    return jax.nn.softmax(logits, axis=-1)


if __name__ == "__main__":
    # Small deterministic config (pool_size=None, dropout=0, bn_lin5_on=False).
    # N = T*H*W = 320 is intentionally NOT a multiple of 128 so the ragged-tile
    # masking and multi-tile accumulation paths are exercised.
    B, C_in, T, H, W = 2, 16, 4, 8, 10
    C_inner, C_out, num_classes = 32, 64, 10

    key = jax.random.PRNGKey(0)
    ks = jax.random.split(key, 8)

    x = jax.random.normal(ks[0], (B, C_in, T, H, W), dtype=jnp.float32)
    w_conv5 = jax.random.normal(ks[1], (C_inner, C_in, 1, 1, 1), dtype=jnp.float32) * 0.1
    bn_gamma = 1.0 + 0.1 * jax.random.normal(ks[2], (C_inner,), dtype=jnp.float32)
    bn_beta = 0.1 * jax.random.normal(ks[3], (C_inner,), dtype=jnp.float32)
    bn_mean = 0.05 * jax.random.normal(ks[4], (C_inner,), dtype=jnp.float32)
    bn_var = 1.0 + 0.1 * jax.random.uniform(ks[5], (C_inner,), dtype=jnp.float32)
    w_lin5 = jax.random.normal(ks[6], (C_out, C_inner, 1, 1, 1), dtype=jnp.float32) * 0.1
    kw, kb = jax.random.split(ks[7])
    w_proj = jax.random.normal(kw, (num_classes, C_out), dtype=jnp.float32) * 0.1
    b_proj = 0.01 * jax.random.normal(kb, (num_classes,), dtype=jnp.float32)

    ref = _reference_forward(x, w_conv5, bn_gamma, bn_beta, bn_mean, bn_var,
                             w_lin5, w_proj, b_proj)

    # bf16 streaming path, explicit small tile: 3 N-tiles, ragged last tile
    # (fast-path tiles + masked last tile + multi-tile accumulation).
    out = x3d_head_forward(x, w_conv5, bn_gamma, bn_beta, bn_mean, bn_var,
                           w_lin5, w_proj, b_proj, n_tile=128)
    out = jax.block_until_ready(out)
    assert out.shape == (B, num_classes)
    np.testing.assert_allclose(np.asarray(out), np.asarray(ref),
                               rtol=2e-2, atol=1e-3)

    # bf16 path, auto tile choice (single 384-lane ragged tile).
    out2 = x3d_head_forward(x, w_conv5, bn_gamma, bn_beta, bn_mean, bn_var,
                            w_lin5, w_proj, b_proj)
    out2 = jax.block_until_ready(out2)
    np.testing.assert_allclose(np.asarray(out2), np.asarray(ref),
                               rtol=2e-2, atol=1e-3)

    # f32 path: exact check of the algorithm (tight tolerance).
    out3 = x3d_head_forward(x, w_conv5, bn_gamma, bn_beta, bn_mean, bn_var,
                            w_lin5, w_proj, b_proj,
                            compute_dtype=jnp.float32)
    out3 = jax.block_until_ready(out3)
    np.testing.assert_allclose(np.asarray(out3), np.asarray(ref),
                               rtol=1e-5, atol=1e-5)

    print("KERNEL_OK")
</pallas_src>

<mosaic_0001>
module attributes {stable_mosaic.version = 11 : i64} {
  func.func @_x3d_head_kernel(%arg0: i32, %arg1: i32, %arg2: memref<1x16x128xbf16, #tpu.memory_space<vmem>>, %arg3: memref<32x16xbf16, #tpu.memory_space<vmem>>, %arg4: memref<32x1xf32, #tpu.memory_space<vmem>>, %arg5: memref<64x32xf32, #tpu.memory_space<vmem>>, %arg6: memref<10x64xf32, #tpu.memory_space<vmem>>, %arg7: memref<10x1xf32, #tpu.memory_space<vmem>>, %arg8: memref<1x10x1xf32, #tpu.memory_space<vmem>>, %arg9: memref<32x1xf32, #tpu.memory_space<vmem>>) attributes {dimension_semantics = [#tpu.dimension_semantics<parallel>, #tpu.dimension_semantics<arbitrary>], iteration_bounds = array<i64: 2, 3>, scalar_prefetch = 0 : i64, scratch_operands = 1 : i64, tpu.core_type = #tpu.core_type<tc>, window_params = [{transform_indices = @transform_0, window_bounds = array<i64: 1, 16, 128>}, {pipeline_mode = #tpu.pipeline_mode<synchronous>, transform_indices = @transform_1, window_bounds = array<i64: 32, 16>}, {pipeline_mode = #tpu.pipeline_mode<synchronous>, transform_indices = @transform_2, window_bounds = array<i64: 32, 1>}, {pipeline_mode = #tpu.pipeline_mode<synchronous>, transform_indices = @transform_3, window_bounds = array<i64: 64, 32>}, {pipeline_mode = #tpu.pipeline_mode<synchronous>, transform_indices = @transform_4, window_bounds = array<i64: 10, 64>}, {pipeline_mode = #tpu.pipeline_mode<synchronous>, transform_indices = @transform_5, window_bounds = array<i64: 10, 1>}, {transform_indices = @transform_6, window_bounds = array<i64: 1, 10, 1>}]} {
    %c2_i32 = arith.constant 2 : i32
    %0 = arith.cmpi eq, %arg1, %c2_i32 : i32
    %c0_i32 = arith.constant 0 : i32
    %1 = arith.cmpi eq, %arg1, %c0_i32 : i32
    %2 = arith.extui %1 : i1 to i32
    %c0_i32_0 = arith.constant 0 : i32
    %3 = arith.cmpi ne, %2, %c0_i32_0 : i32
    scf.if %3 {
      %cst_12 = arith.constant 0.000000e+00 : f32
      %20 = vector.broadcast %cst_12 : f32 to vector<32x1xf32>
      %c0_13 = arith.constant 0 : index
      %c0_14 = arith.constant 0 : index
      %21 = vector.load %arg9[%c0_13, %c0_14] : memref<32x1xf32, #tpu.memory_space<vmem>>, vector<32x1xf32>
      tpu.vector_store %arg9[%c0_13, %c0_14], %20 {strides = array<i32>} : memref<32x1xf32, #tpu.memory_space<vmem>>, vector<32x1xf32>,
    } else {
    }
    %c0 = arith.constant 0 : index
    %c0_1 = arith.constant 0 : index
    %c0_2 = arith.constant 0 : index
    %4 = vector.load %arg2[%c0, %c0_1, %c0_2] : memref<1x16x128xbf16, #tpu.memory_space<vmem>>, vector<1x16x128xbf16>
    %5 = vector.shape_cast %4 : vector<1x16x128xbf16> to vector<16x128xbf16>
    %c0_3 = arith.constant 0 : index
    %c0_4 = arith.constant 0 : index
    %6 = vector.load %arg3[%c0_3, %c0_4] : memref<32x16xbf16, #tpu.memory_space<vmem>>, vector<32x16xbf16>
    %cst = arith.constant dense<0.000000e+00> : vector<32x128xf32>
    %7 = tpu.matmul %6, %5, %cst {dimension_numbers = #tpu.dot_dimension_numbers<[1], [0], [0], [1], [0, 0, 1, 1], [], []>} : vector<32x16xbf16>, vector<16x128xbf16>, vector<32x128xf32> -> vector<32x128xf32>
    %c0_5 = arith.constant 0 : index
    %c0_6 = arith.constant 0 : index
    %8 = vector.load %arg4[%c0_5, %c0_6] : memref<32x1xf32, #tpu.memory_space<vmem>>, vector<32x1xf32>
    %9 = vector.broadcast %8 : vector<32x1xf32> to vector<32x128xf32>
    %10 = arith.addf %7, %9 : vector<32x128xf32>
    %cst_7 = arith.constant 0.000000e+00 : f32
    %11 = vector.broadcast %cst_7 : f32 to vector<32x128xf32>
    %12 = arith.maximumf %10, %11 : vector<32x128xf32>
    %c2_i32_8 = arith.constant 2 : i32
    %13 = arith.cmpi slt, %arg1, %c2_i32_8 : i32
    %14 = arith.extui %13 : i1 to i32
    %c0_i32_9 = arith.constant 0 : i32
    %15 = arith.cmpi ne, %14, %c0_i32_9 : i32
    scf.if %15 {
      %c0_12 = arith.constant 0 : index
      %c0_13 = arith.constant 0 : index
      %20 = vector.load %arg9[%c0_12, %c0_13] : memref<32x1xf32, #tpu.memory_space<vmem>>, vector<32x1xf32>
      %cst_14 = arith.constant dense<0.000000e+00> : vector<32xf32>
      %21 = vector.multi_reduction <add>, %12, %cst_14 [1] : vector<32x128xf32> to vector<32xf32>
      %22 = vector.shape_cast %21 : vector<32xf32> to vector<32x1xf32>
      %23 = arith.addf %20, %22 : vector<32x1xf32>
      %c0_15 = arith.constant 0 : index
      %c0_16 = arith.constant 0 : index
      %24 = vector.load %arg9[%c0_15, %c0_16] : memref<32x1xf32, #tpu.memory_space<vmem>>, vector<32x1xf32>
      tpu.vector_store %arg9[%c0_15, %c0_16], %23 {strides = array<i32>} : memref<32x1xf32, #tpu.memory_space<vmem>>, vector<32x1xf32>,
    } else {
    }
    %16 = arith.extui %0 : i1 to i32
    %c0_i32_10 = arith.constant 0 : i32
    %17 = arith.cmpi ne, %16, %c0_i32_10 : i32
    scf.if %17 {
      %20 = tpu.iota {dimensions = array<i32: 1>} : vector<1x128xi32>
      %c128_i32 = arith.constant 128 : i32
      %21 = arith.muli %arg1, %c128_i32 : i32
      %22 = vector.broadcast %21 : i32 to vector<1x128xi32>
      %23 = arith.addi %22, %20 : vector<1x128xi32>
      %c320_i32 = arith.constant 320 : i32
      %24 = vector.broadcast %c320_i32 : i32 to vector<1x128xi32>
      %25 = arith.cmpi slt, %23, %24 : vector<1x128xi32>
      %c0_12 = arith.constant 0 : index
      %c0_13 = arith.constant 0 : index
      %26 = vector.load %arg9[%c0_12, %c0_13] : memref<32x1xf32, #tpu.memory_space<vmem>>, vector<32x1xf32>
      %cst_14 = arith.constant 0.000000e+00 : f32
      %27 = vector.shape_cast %25 : vector<1x128xi1> to vector<1x128xi1>
      %28 = vector.broadcast %27 : vector<1x128xi1> to vector<32x128xi1>
      %29 = vector.broadcast %cst_14 : f32 to vector<32x128xf32>
      %30 = arith.select %28, %12, %29 : vector<32x128xi1>, vector<32x128xf32>
      %cst_15 = arith.constant dense<0.000000e+00> : vector<32xf32>
      %31 = vector.multi_reduction <add>, %30, %cst_15 [1] : vector<32x128xf32> to vector<32xf32>
      %32 = vector.shape_cast %31 : vector<32xf32> to vector<32x1xf32>
      %33 = arith.addf %26, %32 : vector<32x1xf32>
      %c0_16 = arith.constant 0 : index
      %c0_17 = arith.constant 0 : index
      %34 = vector.load %arg9[%c0_16, %c0_17] : memref<32x1xf32, #tpu.memory_space<vmem>>, vector<32x1xf32>
      tpu.vector_store %arg9[%c0_16, %c0_17], %33 {strides = array<i32>} : memref<32x1xf32, #tpu.memory_space<vmem>>, vector<32x1xf32>,
    } else {
    }
    %18 = arith.extui %0 : i1 to i32
    %c0_i32_11 = arith.constant 0 : i32
    %19 = arith.cmpi ne, %18, %c0_i32_11 : i32
    scf.if %19 {
      %c0_12 = arith.constant 0 : index
      %c0_13 = arith.constant 0 : index
      %20 = vector.load %arg9[%c0_12, %c0_13] : memref<32x1xf32, #tpu.memory_space<vmem>>, vector<32x1xf32>
      %cst_14 = arith.constant 3.125000e-03 : f32
      %21 = vector.broadcast %cst_14 : f32 to vector<32x1xf32>
      %22 = arith.mulf %20, %21 : vector<32x1xf32>
      %c0_15 = arith.constant 0 : index
      %c0_16 = arith.constant 0 : index
      %23 = vector.load %arg5[%c0_15, %c0_16] : memref<64x32xf32, #tpu.memory_space<vmem>>, vector<64x32xf32>
      %cst_17 = arith.constant dense<0.000000e+00> : vector<64x1xf32>
      %24 = tpu.matmul %23, %22, %cst_17 {dimension_numbers = #tpu.dot_dimension_numbers<[1], [0], [0], [1], [0, 0, 1, 1], [], []>} : vector<64x32xf32>, vector<32x1xf32>, vector<64x1xf32> -> vector<64x1xf32>
      %cst_18 = arith.constant 0.000000e+00 : f32
      %25 = vector.broadcast %cst_18 : f32 to vector<64x1xf32>
      %26 = arith.maximumf %24, %25 : vector<64x1xf32>
      %c0_19 = arith.constant 0 : index
      %c0_20 = arith.constant 0 : index
      %27 = vector.load %arg6[%c0_19, %c0_20] : memref<10x64xf32, #tpu.memory_space<vmem>>, vector<10x64xf32>
      %cst_21 = arith.constant dense<0.000000e+00> : vector<10x1xf32>
      %28 = tpu.matmul %27, %26, %cst_21 {dimension_numbers = #tpu.dot_dimension_numbers<[1], [0], [0], [1], [0, 0, 1, 1], [], []>} : vector<10x64xf32>, vector<64x1xf32>, vector<10x1xf32> -> vector<10x1xf32>
      %c0_22 = arith.constant 0 : index
      %c0_23 = arith.constant 0 : index
      %29 = vector.load %arg7[%c0_22, %c0_23] : memref<10x1xf32, #tpu.memory_space<vmem>>, vector<10x1xf32>
      %30 = arith.addf %28, %29 : vector<10x1xf32>
      %cst_24 = arith.constant dense<0xFF800000> : vector<1xf32>
      %31 = vector.multi_reduction <maximumf>, %30, %cst_24 [0] : vector<10x1xf32> to vector<1xf32>
      %32 = vector.shape_cast %31 : vector<1xf32> to vector<1x1xf32>
      %33 = vector.broadcast %32 : vector<1x1xf32> to vector<10x1xf32>
      %34 = arith.subf %30, %33 : vector<10x1xf32>
      %35 = math.exp %34 : vector<10x1xf32>
      %cst_25 = arith.constant dense<0.000000e+00> : vector<1xf32>
      %36 = vector.multi_reduction <add>, %35, %cst_25 [0] : vector<10x1xf32> to vector<1xf32>
      %37 = vector.shape_cast %36 : vector<1xf32> to vector<1x1xf32>
      %38 = vector.broadcast %37 : vector<1x1xf32> to vector<10x1xf32>
      %39 = arith.divf %35, %38 : vector<10x1xf32>
      %c0_26 = arith.constant 0 : index
      %c0_27 = arith.constant 0 : index
      %c0_28 = arith.constant 0 : index
      %40 = vector.load %arg8[%c0_26, %c0_27, %c0_28] : memref<1x10x1xf32, #tpu.memory_space<vmem>>, vector<1x10x1xf32>
      %41 = vector.shape_cast %40 : vector<1x10x1xf32> to vector<10x1xf32>
      %42 = vector.shape_cast %39 : vector<10x1xf32> to vector<1x10x1xf32>
      tpu.vector_store %arg8[%c0_26, %c0_27, %c0_28], %42 {strides = array<i32>} : memref<1x10x1xf32, #tpu.memory_space<vmem>>, vector<1x10x1xf32>,
    } else {
    }
    return
  }
  func.func @transform_0(%arg0: i32, %arg1: i32) -> (i32, i32, i32) {
    %c0_i32 = arith.constant 0 : i32
    %c0_i32_0 = arith.constant 0 : i32
    return %arg0, %c0_i32, %arg1 : i32, i32, i32
  }
  func.func @transform_1(%arg0: i32, %arg1: i32) -> (i32, i32) {
    %c0_i32 = arith.constant 0 : i32
    %c0_i32_0 = arith.constant 0 : i32
    %c0_i32_1 = arith.constant 0 : i32
    return %c0_i32, %c0_i32_0 : i32, i32
  }
  func.func @transform_2(%arg0: i32, %arg1: i32) -> (i32, i32) {
    %c0_i32 = arith.constant 0 : i32
    %c0_i32_0 = arith.constant 0 : i32
    %c0_i32_1 = arith.constant 0 : i32
    return %c0_i32, %c0_i32_0 : i32, i32
  }
  func.func @transform_3(%arg0: i32, %arg1: i32) -> (i32, i32) {
    %c0_i32 = arith.constant 0 : i32
    %c0_i32_0 = arith.constant 0 : i32
    %c0_i32_1 = arith.constant 0 : i32
    return %c0_i32, %c0_i32_0 : i32, i32
  }
  func.func @transform_4(%arg0: i32, %arg1: i32) -> (i32, i32) {
    %c0_i32 = arith.constant 0 : i32
    %c0_i32_0 = arith.constant 0 : i32
    %c0_i32_1 = arith.constant 0 : i32
    return %c0_i32, %c0_i32_0 : i32, i32
  }
  func.func @transform_5(%arg0: i32, %arg1: i32) -> (i32, i32) {
    %c0_i32 = arith.constant 0 : i32
    %c0_i32_0 = arith.constant 0 : i32
    %c0_i32_1 = arith.constant 0 : i32
    return %c0_i32, %c0_i32_0 : i32, i32
  }
  func.func @transform_6(%arg0: i32, %arg1: i32) -> (i32, i32, i32) {
    %c0_i32 = arith.constant 0 : i32
    %c0_i32_0 = arith.constant 0 : i32
    %c0_i32_1 = arith.constant 0 : i32
    return %arg0, %c0_i32, %c0_i32_0 : i32, i32, i32
  }
}

</mosaic_0001>

<llo_original>
// kernel: x3d_head_forward.1
$region0: #{x3d_head_forward.1}
  #allocation0 [shape = 'u32[]', space=smem, size = 0x4, offset = 0x4, fixed_abs, tag = 'smem constant byte address 0x4 - core index']
  #allocation1 [shape = 'u32[72,128]{1,0:T(1,128)}', space=vmem, size = 0x9000, scoped, tag = 'internal scratch']
  #allocation2 [shape = 'f32[32,1]{1,0:T(8,128)}', space=vmem, size = 0x4000, scoped, tag = 'scratch operand']
  %s0 = inlined_call_operand.vmem [shape: bf16[2,16,320], index: 0, kind: input, shape index: {}]
  %s1 = inlined_call_operand.vmem [shape: bf16[32,16], index: 1, kind: input, shape index: {}]
  %s2 = inlined_call_operand.vmem [shape: f32[32,1], index: 2, kind: input, shape index: {}]
  %s3 = inlined_call_operand.vmem [shape: f32[64,32], index: 3, kind: input, shape index: {}]
  %s4 = inlined_call_operand.vmem [shape: f32[10,64], index: 4, kind: input, shape index: {}]
  %s5 = inlined_call_operand.vmem [shape: f32[10,1], index: 5, kind: input, shape index: {}]
  %s6 = inlined_call_operand.vmem [shape: f32[2,10,1], index: 6, kind: output, shape index: {}]
  %s7 = sld [smem:[#allocation0]]
  $region110: #{x3d_head_forward.1} parent=0
    _
  %s9 = ssub.s32 1, %s7
  %s10 = scalar_select 0, %s9, %s7
  $region1: #{x3d_head_forward.1} parent=0
    #allocation3 [shape = 'u8[8192]{0}', space=vmem, size = 0x2000, scoped, tag = 'input window, operand 0']
    loop: start=0, step=1, limit=8
    $region2: #{x3d_head_forward.1} parent=1 // loop_pre_header
      _
    $region3: #{x3d_head_forward.1} parent=1 // loop_header
      %s12 = sphi 0, %s16
      %p13 = scmp.ge.s32.totalorder %s12, 8
      %s19 = sphi 0, %s31
      %s20 = sphi 0, %s27
      %s21 = sphi 0, %s19
      %s22 = sphi 0, %s20
      %s23 = sphi 0, %s21
      %s24 = sphi 0, %s22
      %s36 = sphi 0, %s38
      %s39 = sphi 0, %s36
      %s40 = sphi 0, %s39
      %s56 = sphi 0, %s40
      %s60 = sphi 0, %s60
      %s62 = sphi 0, %s60
      %s63 = sphi 0, %s62
      %s77 = sphi 0, %s63
      %s81 = sphi 0, %s81
      %s83 = sphi 0, %s81
      %s84 = sphi 0, %s83
      %s98 = sphi 0, %s84
      %s102 = sphi 0, %s102
      %s104 = sphi 0, %s102
      %s105 = sphi 0, %s104
      %s119 = sphi 0, %s105
      %s123 = sphi 0, %s123
      %s125 = sphi 0, %s123
      %s126 = sphi 0, %s125
      %s140 = sphi 0, %s126
      %s144 = sphi 0, %s144
      %s146 = sphi 0, %s144
      %s147 = sphi 0, %s146
      %s161 = sphi 0, %s147
      %s167 = sphi 0, %s169
      %s170 = sphi 0, %s167
      %s171 = sphi 0, %s170
      %s187 = sphi 0, %s171
    $region4: #{x3d_head_forward.1} parent=1 // loop_header_branch
      %15 = sbr.rel (%p13) target = $region8
    $region5: #{x3d_head_forward.1} parent=1 // loop_body
      %s17 = ssub.s32 %s12, 1
      %s18 = ssub.s32 %s12, 2
      %s25 = sadd.s32 1, %s20
      %p26 = scmp.ge.s32.totalorder %s25, 3
      %s27 = scalar_select %p26, 0, %s25
      %s28 = sadd.s32 1, %s19
      %s29 = scalar_select %p26, %s28, %s19
      %p30 = scmp.ge.s32.totalorder %s29, 2
      %s31 = scalar_select %p30, 0, %s29
      %s32 = ssub.s32 %s19, %s31
      %s33 = ssub.s32 %s20, %s27
      %s34 = sor.u32 %s32, %s33
      %p35 = scmp.eq.s32.totalorder %s34, 0
      %s37 = sadd.s32 %s36, 1
      %s38 = scalar_select %p35, %s36, %s37
      %p41 = pneg %p35
      %p42 = scmp.eq.s32.totalorder %s12, 5
      %p43 = por %p41, %p42
      %p44 = scmp.ne.s32.totalorder %s36, %s39
      %p45 = scmp.eq.s32.totalorder %s12, 0
      %p46 = por %p44, %p45
      %p47 = scmp.ne.s32.totalorder %s36, %s39
      %p48 = scmp.eq.s32.totalorder %s17, 5
      %p49 = por %p47, %p48
      %p50 = scmp.ne.s32.totalorder %s39, %s40
      %p51 = scmp.eq.s32.totalorder %s17, 0
      %p52 = por %p50, %p51
      %p53 = scmp.ne.s32.totalorder %s39, %s40
      %p54 = scmp.eq.s32.totalorder %s18, 5
      %p55 = por %p53, %p54
      %p57 = scmp.ne.s32.totalorder %s40, %s56
      %p58 = scmp.eq.s32.totalorder %s18, 0
      %p59 = por %p57, %p58
      %s61 = sadd.s32 %s60, 1
      %p64 = scmp.eq.s32.totalorder %s12, 5
      %p65 = scmp.ne.s32.totalorder %s60, %s62
      %p66 = scmp.eq.s32.totalorder %s12, 0
      %p67 = por %p65, %p66
      %p68 = scmp.ne.s32.totalorder %s60, %s62
      %p69 = scmp.eq.s32.totalorder %s17, 5
      %p70 = por %p68, %p69
      %p71 = scmp.ne.s32.totalorder %s62, %s63
      %p72 = scmp.eq.s32.totalorder %s17, 0
      %p73 = por %p71, %p72
      %p74 = scmp.ne.s32.totalorder %s62, %s63
      %p75 = scmp.eq.s32.totalorder %s18, 5
      %p76 = por %p74, %p75
      %p78 = scmp.ne.s32.totalorder %s63, %s77
      %p79 = scmp.eq.s32.totalorder %s18, 0
      %p80 = por %p78, %p79
      %s82 = sadd.s32 %s81, 1
      %p85 = scmp.eq.s32.totalorder %s12, 5
      %p86 = scmp.ne.s32.totalorder %s81, %s83
      %p87 = scmp.eq.s32.totalorder %s12, 0
      %p88 = por %p86, %p87
      %p89 = scmp.ne.s32.totalorder %s81, %s83
      %p90 = scmp.eq.s32.totalorder %s17, 5
      %p91 = por %p89, %p90
      %p92 = scmp.ne.s32.totalorder %s83, %s84
      %p93 = scmp.eq.s32.totalorder %s17, 0
      %p94 = por %p92, %p93
      %p95 = scmp.ne.s32.totalorder %s83, %s84
      %p96 = scmp.eq.s32.totalorder %s18, 5
      %p97 = por %p95, %p96
      %p99 = scmp.ne.s32.totalorder %s84, %s98
      %p100 = scmp.eq.s32.totalorder %s18, 0
      %p101 = por %p99, %p100
      %s103 = sadd.s32 %s102, 1
      %p106 = scmp.eq.s32.totalorder %s12, 5
      %p107 = scmp.ne.s32.totalorder %s102, %s104
      %p108 = scmp.eq.s32.totalorder %s12, 0
      %p109 = por %p107, %p108
      %p110 = scmp.ne.s32.totalorder %s102, %s104
      %p111 = scmp.eq.s32.totalorder %s17, 5
      %p112 = por %p110, %p111
      %p113 = scmp.ne.s32.totalorder %s104, %s105
      %p114 = scmp.eq.s32.totalorder %s17, 0
      %p115 = por %p113, %p114
      %p116 = scmp.ne.s32.totalorder %s104, %s105
      %p117 = scmp.eq.s32.totalorder %s18, 5
      %p118 = por %p116, %p117
      %p120 = scmp.ne.s32.totalorder %s105, %s119
      %p121 = scmp.eq.s32.totalorder %s18, 0
      %p122 = por %p120, %p121
      %s124 = sadd.s32 %s123, 1
      %p127 = scmp.eq.s32.totalorder %s12, 5
      %p128 = scmp.ne.s32.totalorder %s123, %s125
      %p129 = scmp.eq.s32.totalorder %s12, 0
      %p130 = por %p128, %p129
      %p131 = scmp.ne.s32.totalorder %s123, %s125
      %p132 = scmp.eq.s32.totalorder %s17, 5
      %p133 = por %p131, %p132
      %p134 = scmp.ne.s32.totalorder %s125, %s126
      %p135 = scmp.eq.s32.totalorder %s17, 0
      %p136 = por %p134, %p135
      %p137 = scmp.ne.s32.totalorder %s125, %s126
      %p138 = scmp.eq.s32.totalorder %s18, 5
      %p139 = por %p137, %p138
      %p141 = scmp.ne.s32.totalorder %s126, %s140
      %p142 = scmp.eq.s32.totalorder %s18, 0
      %p143 = por %p141, %p142
      %s145 = sadd.s32 %s144, 1
      %p148 = scmp.eq.s32.totalorder %s12, 5
      %p149 = scmp.ne.s32.totalorder %s144, %s146
      %p150 = scmp.eq.s32.totalorder %s12, 0
      %p151 = por %p149, %p150
      %p152 = scmp.ne.s32.totalorder %s144, %s146
      %p153 = scmp.eq.s32.totalorder %s17, 5
      %p154 = por %p152, %p153
      %p155 = scmp.ne.s32.totalorder %s146, %s147
      %p156 = scmp.eq.s32.totalorder %s17, 0
      %p157 = por %p155, %p156
      %p158 = scmp.ne.s32.totalorder %s146, %s147
      %p159 = scmp.eq.s32.totalorder %s18, 5
      %p160 = por %p158, %p159
      %p162 = scmp.ne.s32.totalorder %s147, %s161
      %p163 = scmp.eq.s32.totalorder %s18, 0
      %p164 = por %p162, %p163
      %s165 = ssub.s32 %s19, %s31
      %p166 = scmp.eq.s32.totalorder %s165, 0
      %s168 = sadd.s32 %s167, 1
      %s169 = scalar_select %p166, %s167, %s168
      %p172 = pneg %p166
      %p173 = scmp.eq.s32.totalorder %s12, 5
      %p174 = por %p172, %p173
      %p175 = scmp.ne.s32.totalorder %s167, %s170
      %p176 = scmp.eq.s32.totalorder %s12, 0
      %p177 = por %p175, %p176
      %p178 = scmp.ne.s32.totalorder %s167, %s170
      %p179 = scmp.eq.s32.totalorder %s17, 5
      %p180 = por %p178, %p179
      %p181 = scmp.ne.s32.totalorder %s170, %s171
      %p182 = scmp.eq.s32.totalorder %s17, 0
      %p183 = por %p181, %p182
      %p184 = scmp.ne.s32.totalorder %s170, %s171
      %p185 = scmp.eq.s32.totalorder %s18, 5
      %p186 = por %p184, %p185
      %p188 = scmp.ne.s32.totalorder %s171, %s187
      %p189 = scmp.eq.s32.totalorder %s18, 0
      %p190 = por %p188, %p189
      %p191 = scmp.le.s32.totalorder 1, %s12
      %p192 = scmp.lt.s32.totalorder %s12, 7
      %p193 = pnand %p191, %p192
      %p194 = pneg %p193
      // Predicated region
      $region9: #{x3d_head_forward.1} parent=5 // pred_check
        _
      $region10: #{x3d_head_forward.1} parent=5 // pred_check_branch
        %196 = sbr.rel (%p193) target = $region12
      $region11: #{x3d_head_forward.1} parent=5 // pred_region
        %s197 = ssub.s32 %s12, 1
        // Predicated region
        $region13: #{x3d_head_forward.1} parent=11 // pred_check
          %p198 = pneg %p73
        $region14: #{x3d_head_forward.1} parent=11 // pred_check_branch
          %200 = sbr.rel (%p198) target = $region16
        $region15: #{x3d_head_forward.1} parent=11 // pred_region
          _
        $region16: #{x3d_head_forward.1} parent=11 // pred_fallthru
          _
        // Predicated region
        $region17: #{x3d_head_forward.1} parent=11 // pred_check
          %p201 = pneg %p94
        $region18: #{x3d_head_forward.1} parent=11 // pred_check_branch
          %203 = sbr.rel (%p201) target = $region20
        $region19: #{x3d_head_forward.1} parent=11 // pred_region
          _
        $region20: #{x3d_head_forward.1} parent=11 // pred_fallthru
          _
        // Predicated region
        $region21: #{x3d_head_forward.1} parent=11 // pred_check
          %p204 = pneg %p115
        $region22: #{x3d_head_forward.1} parent=11 // pred_check_branch
          %206 = sbr.rel (%p204) target = $region24
        $region23: #{x3d_head_forward.1} parent=11 // pred_region
          _
        $region24: #{x3d_head_forward.1} parent=11 // pred_fallthru
          _
        // Predicated region
        $region25: #{x3d_head_forward.1} parent=11 // pred_check
          %p207 = pneg %p136
        $region26: #{x3d_head_forward.1} parent=11 // pred_check_branch
          %209 = sbr.rel (%p207) target = $region28
        $region27: #{x3d_head_forward.1} parent=11 // pred_region
          _
        $region28: #{x3d_head_forward.1} parent=11 // pred_fallthru
          _
        // Predicated region
        $region29: #{x3d_head_forward.1} parent=11 // pred_check
          %p210 = pneg %p157
        $region30: #{x3d_head_forward.1} parent=11 // pred_check_branch
          %212 = sbr.rel (%p210) target = $region32
        $region31: #{x3d_head_forward.1} parent=11 // pred_region
          _
        $region32: #{x3d_head_forward.1} parent=11 // pred_fallthru
          _
      $region12: #{x3d_head_forward.1} parent=5 // pred_fallthru
        _
      %p213 = scmp.lt.s32.totalorder %s12, 6
      // Predicated region
      $region33: #{x3d_head_forward.1} parent=5 // pred_check
        %p214 = pneg %p213
      $region34: #{x3d_head_forward.1} parent=5 // pred_check_branch
        %216 = sbr.rel (%p214) target = $region36
      $region35: #{x3d_head_forward.1} parent=5 // pred_region
        // Predicated region
        $region37: #{x3d_head_forward.1} parent=35 // pred_check
          %p217 = pneg %p46
        $region38: #{x3d_head_forward.1} parent=35 // pred_check_branch
          %219 = sbr.rel (%p217) target = $region40
        $region39: #{x3d_head_forward.1} parent=35 // pred_region
          %s220 = sand.u32 %s36, 1
          %s221 = sand.u32 %s36, 1
          %s222 = smul.addr %s221, 8
          %s223 = scalar_lea.vmem [#allocation3], %s222
          %s224 = smul.addr %s19, 6
          %s225 = sadd.s32 %s20, %s224
          %s226 = smul.addr %s225, 4
          %s227 = scalar_lea.vmem %s0, %s226
          // Predicated region
          $region41: #{x3d_head_forward.1} parent=39 // pred_check
            _
          $region42: #{x3d_head_forward.1} parent=39 // pred_check_branch
            %229 = sbr.rel (0) target = $region44
          $region43: #{x3d_head_forward.1} parent=39 // pred_region
            // Predicated region
            $region45: #{x3d_head_forward.1} parent=43 // pred_check
              _
            $region46: #{x3d_head_forward.1} parent=43 // pred_check_branch
              %231 = sbr.rel target = $region48
            $region47: #{x3d_head_forward.1} parent=43 // pred_region
              // Predicated region
              $region60: #{x3d_head_forward.1} parent=47 // pred_check
                _
              $region61: #{x3d_head_forward.1} parent=47 // pred_check_branch
                %249 = sbr.rel (0) target = $region63
              $region62: #{x3d_head_forward.1} parent=47 // pred_region
                loop: start=0, step=1, limit=1
                $region64: #{x3d_head_forward.1} parent=62 // loop_pre_header
                  _
                $region65: #{x3d_head_forward.1} parent=62 // loop_header
                  %s251 = sphi 0, %s255
                  %p252 = scmp.ge.s32.totalorder %s251, 1
                  %s256 = sphi %s227, %s227
                  %s257 = sphi %s223, %s223
                $region66: #{x3d_head_forward.1} parent=62 // loop_header_branch
                  %254 = sbr.rel (%p252) target = $region70
                $region67: #{x3d_head_forward.1} parent=62 // loop_body
                  _
                $region68: #{x3d_head_forward.1} parent=62 // loop_footer
                  %s255 = sadd.s32 1, %s251
                $region69: #{x3d_head_forward.1} parent=62 // loop_footer_branch
                  %250 = sbr.rel target = $region65
                $region70: #{x3d_head_forward.1} parent=62 // loop_exit
                  _
                %s259 = ssub.s32 16, 1
                loop: start=0, step=1, limit=1
                $region71: #{x3d_head_forward.1} parent=62 // loop_pre_header
                  _
                $region72: #{x3d_head_forward.1} parent=62 // loop_header
                  %s261 = sphi 0, %s265
                  %p262 = scmp.ge.s32.totalorder %s261, 1
                  %s266 = sphi %s227, %s227
                  %s267 = sphi %s223, %s223
                $region73: #{x3d_head_forward.1} parent=62 // loop_header_branch
                  %264 = sbr.rel (%p262) target = $region77
                $region74: #{x3d_head_forward.1} parent=62 // loop_body
                  %v268 = vld [vmem:[%s266] sm:%s259]
                  %269 = vst [vmem:[%s267] sm:%s259] %v268
                  %v270 = vld [vmem:[%s266 + $0xc] sm:%s259]
                  %271 = vst [vmem:[%s267 + $0x4] sm:%s259] %v270
                $region75: #{x3d_head_forward.1} parent=62 // loop_footer
                  %s265 = sadd.s32 1, %s261
                $region76: #{x3d_head_forward.1} parent=62 // loop_footer_branch
                  %260 = sbr.rel target = $region72
                $region77: #{x3d_head_forward.1} parent=62 // loop_exit
                  _
              $region63: #{x3d_head_forward.1} parent=47 // pred_fallthru
                _
            $region48: #{x3d_head_forward.1} parent=43 // pred_fallthru
              _
            // Predicated region
            $region49: #{x3d_head_forward.1} parent=43 // pred_check
              _
            $region50: #{x3d_head_forward.1} parent=43 // pred_check_branch
              %233 = sbr.rel (0) target = $region52
            $region51: #{x3d_head_forward.1} parent=43 // pred_region
              %s235 = ssub.s32 16, 1
              loop: start=0, step=1, limit=1
              $region53: #{x3d_head_forward.1} parent=51 // loop_pre_header
                _
              $region54: #{x3d_head_forward.1} parent=51 // loop_header
                %s237 = sphi 0, %s241
                %p238 = scmp.ge.s32.totalorder %s237, 1
                %s242 = sphi %s227, %s227
                %s243 = sphi %s223, %s223
              $region55: #{x3d_head_forward.1} parent=51 // loop_header_branch
                %240 = sbr.rel (%p238) target = $region59
              $region56: #{x3d_head_forward.1} parent=51 // loop_body
                %v244 = vld [vmem:[%s242] sm:%s235]
                %245 = vst [vmem:[%s243] sm:%s235] %v244
                %v246 = vld [vmem:[%s242 + $0xc] sm:%s235]
                %247 = vst [vmem:[%s243 + $0x4] sm:%s235] %v246
              $region57: #{x3d_head_forward.1} parent=51 // loop_footer
                %s241 = sadd.s32 1, %s237
              $region58: #{x3d_head_forward.1} parent=51 // loop_footer_branch
                %236 = sbr.rel target = $region54
              $region59: #{x3d_head_forward.1} parent=51 // loop_exit
                _
            $region52: #{x3d_head_forward.1} parent=43 // pred_fallthru
              _
          $region44: #{x3d_head_forward.1} parent=39 // pred_fallthru
            _
          %272 = vnop
        $region40: #{x3d_head_forward.1} parent=35 // pred_fallthru
          _
      $region36: #{x3d_head_forward.1} parent=5 // pred_fallthru
        _
      %p273 = scmp.le.s32.totalorder 1, %s12
      %p274 = scmp.lt.s32.totalorder %s12, 7
      %p275 = pnand %p273, %p274
      %p276 = pneg %p275
      // Predicated region
      $region78: #{x3d_head_forward.1} parent=5 // pred_check
        _
      $region79: #{x3d_head_forward.1} parent=5 // pred_check_branch
        %278 = sbr.rel (%p275) target = $region81
      $region80: #{x3d_head_forward.1} parent=5 // pred_region
        %s279 = ssub.s32 %s12, 1
        %s280 = sand.u32 %s39, 1
        %s281 = sand.u32 %s39, 1
        %s282 = smul.addr %s281, 8
        %s283 = scalar_lea.vmem [#allocation3], %s282
        // Predicated region
        $region82: #{x3d_head_forward.1} parent=80 // pred_check
          %p284 = pneg %p52
        $region83: #{x3d_head_forward.1} parent=80 // pred_check_branch
          %286 = sbr.rel (%p284) target = $region85
        $region84: #{x3d_head_forward.1} parent=80 // pred_region
          _
        $region85: #{x3d_head_forward.1} parent=80 // pred_fallthru
          _
        %s287 = sand.u32 %s39, 1
        %s288 = sand.u32 %s39, 1
        %s289 = smul.addr %s288, 8
        %s290 = scalar_lea.vmem [#allocation3], %s289
        %p291 = pneg %p52
        %p292 = pneg %p49
        %p293 = pneg %p73
        %p294 = pneg %p70
        %p295 = pneg %p94
        %p296 = pneg %p91
        %p297 = pneg %p115
        %p298 = pneg %p112
        %p299 = pneg %p136
        %p300 = pneg %p133
        %p301 = pneg %p157
        %p302 = pneg %p154
        %p303 = pneg %p183
        %p304 = pneg %p180
        %p305 = scmp.lt.s32.totalorder %s21, 1
        %s306 = scalar_select %p305, %s21, 1
        %s307 = smul.addr %s306, 2
        %s308 = smul.addr %s307, 8
        %s309 = scalar_lea.vmem %s6, %s308
        %p310 = scmp.lt.s32.totalorder %s21, 1
        %s311 = scalar_select %p310, %s21, 1
        %s312 = smul.addr %s311, 2
        %s313 = smul.addr %s312, 8
        %s314 = scalar_lea.vmem %s6, %s313
        %p316 = scmp.eq.s32.totalorder %s22, 2
        %p317 = scmp.eq.s32.totalorder %s22, 0
        // Predicated region
        $region86: #{x3d_head_forward.1} parent=80 // pred_check
          %p318 = pneg %p317
        $region87: #{x3d_head_forward.1} parent=80 // pred_check_branch
          %320 = sbr.rel (%p318) target = $region89
        $region88: #{x3d_head_forward.1} parent=80 // pred_region
          %vm321 = vcmask 7168
          %322 = vst.msk [vmem:[#allocation2] sm:$0xff] %vm321, 0.0
          %323 = vst.msk [vmem:[#allocation2 + $0x8] sm:$0xff] %vm321, 0.0
          %324 = vst.msk [vmem:[#allocation2 + $0x10] sm:$0xff] %vm321, 0.0
          %325 = vst.msk [vmem:[#allocation2 + $0x18] sm:$0xff] %vm321, 0.0
        $region89: #{x3d_head_forward.1} parent=80 // pred_fallthru
          _
        %v326 = vld [vmem:[%s283] sm:$0xf]
        %v327 = vld [vmem:[%s283 + $0x4] sm:$0xf]
        %v328 = vld [vmem:[%s1] sm:$0xf]
        %v329 = vld [vmem:[%s1 + $0x4] sm:$0xf]
        %v330 = vld [vmem:[%s1 + $0x8] sm:$0xf]
        %v331 = vld [vmem:[%s1 + $0xc] sm:$0xf]
        %v332 = vld [vmem:[%s2] sm:$0xff]
        %v333 = vld [vmem:[%s2 + $0x8] sm:$0xff]
        %v334 = vld [vmem:[%s2 + $0x10] sm:$0xff]
        %v335 = vld [vmem:[%s2 + $0x18] sm:$0xff]
        %337 = vset.pattern.permute.xlu0 0
        %338 = vperm.xlu0 %337, %v332
        %v339 = vpop.permute.xlu0 %338
        %342 = vset.pattern.permute.xlu0 0
        %343 = vperm.xlu0 %342, %v333
        %v344 = vpop.permute.xlu0 %343
        %347 = vset.pattern.permute.xlu0 0
        %348 = vperm.xlu0 %347, %v334
        %v349 = vpop.permute.xlu0 %348
        %352 = vset.pattern.permute.xlu0 0
        %353 = vperm.xlu0 %352, %v335
        %v354 = vpop.permute.xlu0 %353
        %v360 = vunpack.c.l.b16 %v328
        %v361 = vunpack.c.l.b16 %v329
        %v362 = vunpack.c.l.b16 %v330
        %v363 = vunpack.c.l.b16 %v331
        %v364 = vpack.c.b16 %v361, %v360
        %v365 = vpack.c.b16 %v363, %v362
        %v368 = vunpack.c.l.b16 %v326
        %v369 = vunpack.c.l.b16 %v327
        %v370 = vpack.c.b16 %v369, %v368
        %vm372 = vcmask 130048
        %v374 = vsel %vm372, %v364, 0
        %v377 = vsel %vm372, %v365, 0
        %379 = vmatpush.bf16.msra.mxu0 0
        %380 = vmatpush.bf16.msra.mxu0 0
        %381 = vmatpush.bf16.msra.mxu0 0
        %382 = vmatpush.bf16.msra.mxu0 0
        %383 = vmatpush.bf16.msra.mxu0 0
        %384 = vmatpush.bf16.msra.mxu0 0
        %385 = vmatpush.bf16.msra.mxu0 0
        %386 = vmatpush.bf16.msra.mxu0 %v370
        %387 = vmatmul.bf16.gmra.mxu0 %v374
        %v388 = vpop.f32.mrf.mxu0
        %v389 = vadd.f32 %v339, %v388
        %v390 = vpop.f32.mrf.mxu0
        %v391 = vadd.f32 %v344, %v390
        %392 = vmatmul.bf16.gmra.mxu0 %v377
        %v393 = vpop.f32.mrf.mxu0
        %v394 = vadd.f32 %v349, %v393
        %v395 = vpop.f32.mrf.mxu0
        %v396 = vadd.f32 %v354, %v395
        %397 = vdwg.mxu0
        %v398 = vmax.f32 %v389, 0.0
        %v399 = vmax.f32 %v391, 0.0
        %v400 = vmax.f32 %v394, 0.0
        %v401 = vmax.f32 %v396, 0.0
        %p402 = scmp.lt.s32.totalorder %s22, 2
        // Predicated region
        $region90: #{x3d_head_forward.1} parent=80 // pred_check
          %p403 = pneg %p402
        $region91: #{x3d_head_forward.1} parent=80 // pred_check_branch
          %405 = sbr.rel (%p403) target = $region93
        $region92: #{x3d_head_forward.1} parent=80 // pred_region
          %v406 = vld [vmem:[#allocation2] sm:$0xff]
          %v407 = vld [vmem:[#allocation2 + $0x8] sm:$0xff]
          %v408 = vld [vmem:[#allocation2 + $0x10] sm:$0xff]
          %v409 = vld [vmem:[#allocation2 + $0x18] sm:$0xff]
          %410 = vadd.xlane.f32.xlu0 %v398
          %v411 = vpop.xlane.xlu0 %410
          %412 = vadd.xlane.f32.xlu0 %v399
          %v413 = vpop.xlane.xlu0 %412
          %414 = vadd.xlane.f32.xlu0 %v400
          %v415 = vpop.xlane.xlu0 %414
          %416 = vadd.xlane.f32.xlu0 %v401
          %v417 = vpop.xlane.xlu0 %416
          %v418 = vadd.f32 %v406, %v411
          %v419 = vadd.f32 %v407, %v413
          %v420 = vadd.f32 %v408, %v415
          %v421 = vadd.f32 %v409, %v417
          %vm422 = vcmask 7168
          %423 = vst.msk [vmem:[#allocation2] sm:$0xff] %vm422, %v418
          %424 = vst.msk [vmem:[#allocation2 + $0x8] sm:$0xff] %vm422, %v419
          %425 = vst.msk [vmem:[#allocation2 + $0x10] sm:$0xff] %vm422, %v420
          %426 = vst.msk [vmem:[#allocation2 + $0x18] sm:$0xff] %vm422, %v421
        $region93: #{x3d_head_forward.1} parent=80 // pred_fallthru
          _
        // Predicated region
        $region94: #{x3d_head_forward.1} parent=80 // pred_check
          %p427 = pneg %p316
        $region95: #{x3d_head_forward.1} parent=80 // pred_check_branch
          %429 = sbr.rel (%p427) target = $region97
        $region96: #{x3d_head_forward.1} parent=80 // pred_region
          %v430 = vlaneseq
          %v431 = vand.u32 %v430, 127
          %s432 = smul.u32 %s22, 128
          %v433 = vstv %s432
          %v434 = vadd.s32 %v433, %v431
          %vm435 = vcmp.lt.s32.totalorder %v434, 320
          %v436 = vld [vmem:[#allocation2] sm:$0xff]
          %v437 = vld [vmem:[#allocation2 + $0x8] sm:$0xff]
          %v438 = vld [vmem:[#allocation2 + $0x10] sm:$0xff]
          %v439 = vld [vmem:[#allocation2 + $0x18] sm:$0xff]
          %v440 = vsel %vm435, 1, 0
          %vm441 = vcmp.eq.s32.totalorder %v440, 1
          %v442 = vsel %vm441, %v398, 0.0
          %v443 = vsel %vm441, %v399, 0.0
          %v444 = vsel %vm441, %v400, 0.0
          %v445 = vsel %vm441, %v401, 0.0
          %446 = vadd.xlane.f32.xlu0 %v442
          %v447 = vpop.xlane.xlu0 %446
          %448 = vadd.xlane.f32.xlu0 %v443
          %v449 = vpop.xlane.xlu0 %448
          %450 = vadd.xlane.f32.xlu0 %v444
          %v451 = vpop.xlane.xlu0 %450
          %452 = vadd.xlane.f32.xlu0 %v445
          %v453 = vpop.xlane.xlu0 %452
          %v454 = vadd.f32 %v436, %v447
          %v455 = vadd.f32 %v437, %v449
          %v456 = vadd.f32 %v438, %v451
          %v457 = vadd.f32 %v439, %v453
          %vm458 = vcmask 7168
          %459 = vst.msk [vmem:[#allocation2] sm:$0xff] %vm458, %v454
          %460 = vst.msk [vmem:[#allocation2 + $0x8] sm:$0xff] %vm458, %v455
          %461 = vst.msk [vmem:[#allocation2 + $0x10] sm:$0xff] %vm458, %v456
          %462 = vst.msk [vmem:[#allocation2 + $0x18] sm:$0xff] %vm458, %v457
          %v463 = vld [vmem:[#allocation2] sm:$0xff]
          %v464 = vld [vmem:[#allocation2 + $0x8] sm:$0xff]
          %v465 = vld [vmem:[#allocation2 + $0x10] sm:$0xff]
          %v466 = vld [vmem:[#allocation2 + $0x18] sm:$0xff]
          %v467 = vmul.f32 %v463, 0.003125
          %v468 = vmul.f32 %v464, 0.003125
          %v469 = vmul.f32 %v465, 0.003125
          %v470 = vmul.f32 %v466, 0.003125
          %v471 = vld [vmem:[%s3] sm:$0xff]
          %v472 = vld [vmem:[%s3 + $0x8] sm:$0xff]
          %v473 = vld [vmem:[%s3 + $0x10] sm:$0xff]
          %v474 = vld [vmem:[%s3 + $0x18] sm:$0xff]
          %v475 = vld [vmem:[%s3 + $0x20] sm:$0xff]
          %v476 = vld [vmem:[%s3 + $0x28] sm:$0xff]
          %v477 = vld [vmem:[%s3 + $0x30] sm:$0xff]
          %v478 = vld [vmem:[%s3 + $0x38] sm:$0xff]
          %vm479 = vcmask 261120
          %v481 = vsel %vm479, %v471, 0
          %v484 = vsel %vm479, %v472, 0
          %v487 = vsel %vm479, %v473, 0
          %v490 = vsel %vm479, %v474, 0
          %v493 = vsel %vm479, %v475, 0
          %v496 = vsel %vm479, %v476, 0
          %v499 = vsel %vm479, %v477, 0
          %v502 = vsel %vm479, %v478, 0
          %504 = vmatpush.msra.mxu0 0.0
          %505 = vmatpush.msra.mxu0 0.0
          %506 = vmatpush.msra.mxu0 0.0
          %507 = vmatpush.msra.mxu0 0.0
          %508 = vmatpush.msra.mxu0 0.0
          %509 = vmatpush.msra.mxu0 0.0
          %510 = vmatpush.msra.mxu0 0.0
          %511 = vmatpush.msra.mxu0 0.0
          %512 = vmatpush.msra.mxu0 0.0
          %513 = vmatpush.msra.mxu0 0.0
          %514 = vmatpush.msra.mxu0 0.0
          %515 = vmatpush.msra.mxu0 0.0
          %516 = vmatpush.msra.mxu0 %v470
          %517 = vmatpush.msra.mxu0 %v469
          %518 = vmatpush.msra.mxu0 %v468
          %519 = vmatpush.msra.mxu0 %v467
          %520 = vmatmul.f32.gmra.mxu0 %v481
          %v521 = vpop.f32.mrf.mxu0
          %v522 = vadd.f32 0.0, %v521
          %523 = vmatmul.f32.gmra.mxu0 %v484
          %v524 = vpop.f32.mrf.mxu0
          %v525 = vadd.f32 0.0, %v524
          %526 = vmatmul.f32.gmra.mxu0 %v487
          %v527 = vpop.f32.mrf.mxu0
          %v528 = vadd.f32 0.0, %v527
          %529 = vmatmul.f32.gmra.mxu0 %v490
          %v530 = vpop.f32.mrf.mxu0
          %v531 = vadd.f32 0.0, %v530
          %532 = vmatmul.f32.gmra.mxu0 %v493
          %v533 = vpop.f32.mrf.mxu0
          %v534 = vadd.f32 0.0, %v533
          %535 = vmatmul.f32.gmra.mxu0 %v496
          %v536 = vpop.f32.mrf.mxu0
          %v537 = vadd.f32 0.0, %v536
          %538 = vmatmul.f32.gmra.mxu0 %v499
          %v539 = vpop.f32.mrf.mxu0
          %v540 = vadd.f32 0.0, %v539
          %541 = vmatmul.f32.gmra.mxu0 %v502
          %v542 = vpop.f32.mrf.mxu0
          %v543 = vadd.f32 0.0, %v542
          %544 = vdwg.mxu0
          %v545 = vmax.f32 %v522, 0.0
          %v546 = vmax.f32 %v525, 0.0
          %v547 = vmax.f32 %v528, 0.0
          %v548 = vmax.f32 %v531, 0.0
          %v549 = vmax.f32 %v534, 0.0
          %v550 = vmax.f32 %v537, 0.0
          %v551 = vmax.f32 %v540, 0.0
          %v552 = vmax.f32 %v543, 0.0
          %v553 = vld [vmem:[%s4] sm:$0xff]
          %v554 = vld [vmem:[%s4 + $0x8] sm:$0x3]
          %v555 = vld [vmem:[%s5] sm:$0xff]
          %v556 = vld [vmem:[%s5 + $0x8] sm:$0x3]
          %vm557 = vcmask 523264
          %v559 = vsel %vm557, %v553, 0
          %v562 = vsel %vm557, %v554, 0
          %564 = vmatpush.msra.mxu0 0.0
          %565 = vmatpush.msra.mxu0 0.0
          %566 = vmatpush.msra.mxu0 0.0
          %567 = vmatpush.msra.mxu0 0.0
          %568 = vmatpush.msra.mxu0 0.0
          %569 = vmatpush.msra.mxu0 0.0
          %570 = vmatpush.msra.mxu0 0.0
          %571 = vmatpush.msra.mxu0 0.0
          %572 = vmatpush.msra.mxu0 %v552
          %573 = vmatpush.msra.mxu0 %v551
          %574 = vmatpush.msra.mxu0 %v550
          %575 = vmatpush.msra.mxu0 %v549
          %576 = vmatpush.msra.mxu0 %v548
          %577 = vmatpush.msra.mxu0 %v547
          %578 = vmatpush.msra.mxu0 %v546
          %579 = vmatpush.msra.mxu0 %v545
          %580 = vmatmul.f32.gmra.mxu0 %v559
          %v581 = vpop.f32.mrf.mxu0
          %v582 = vadd.f32 %v555, %v581
          %583 = vmatmul.f32.gmra.mxu0 %v562
          %v584 = vpop.f32.mrf.mxu0
          %v585 = vadd.f32 %v556, %v584
          %586 = vdwg.mxu0
          %v587 = vsel %vm458, %v582, -inf
          %vm588 = vcmask 1024
          %v589 = vsel %vm588, %v585, -inf
          %v590 = vmax.f32 %v587, %v589
          %v591 = vrot.slane %v590, 4
          %v592 = vmax.f32 %v590, %v591
          %v593 = vrot.slane %v592, 2
          %v594 = vmax.f32 %v592, %v593
          %v595 = vrot.slane %v594, 1
          %v596 = vmax.f32 %v594, %v595
          %v597 = vsub.f32 %v582, %v596
          %v598 = vsub.f32 %v585, %v596
          %v599 = vmul.f32 %v597, 1.442695
          %v600 = vpow.pop %v599
          %v601 = vmul.f32 %v598, 1.442695
          %v602 = vpow.pop %v601
          %v603 = vsel %vm458, %v600, 0.0
          %v604 = vsel %vm588, %v602, 0.0
          %v605 = vadd.f32 %v603, %v604
          %v606 = vrot.slane %v605, 4
          %v607 = vadd.f32 %v605, %v606
          %v608 = vrot.slane %v607, 2
          %v609 = vadd.f32 %v607, %v608
          %v610 = vrot.slane %v609, 1
          %v611 = vadd.f32 %v609, %v610
          %v612 = vrcp.pop %v611
          %v613 = vmul.f32 %v611, %v612
          %v614 = vsub.f32 1.0, %v613
          %v615 = vmul.f32 %v612, %v614
          %v616 = vadd.f32 %v612, %v615
          %vm617 = vweird.f32 %v611
          %vm618 = vweird.f32 %v612
          %vm619 = vmor %vm617, %vm618
          %v620 = vsel %vm619, %v612, %v616
          %v621 = vand.u32 2147483647, %v611
          %vm622 = vcmp.eq.f32.partialorder %v621, 8.507059e+37
          %v623 = vand.u32 %v611, 2147483648
          %v624 = vor.u32 1.1754944e-38, %v623
          %v625 = vsel %vm622, %v624, %v620
          %v626 = vmul.f32 %v600, %v625
          %v627 = vmul.f32 %v602, %v625
          %628 = vst.msk [vmem:[%s314] sm:$0xff] %vm458, %v626
          %629 = vst.msk [vmem:[%s314 + $0x8] sm:$0x3] %vm588, %v627
        $region97: #{x3d_head_forward.1} parent=80 // pred_fallthru
          _
        %p630 = scmp.lt.s32.totalorder %s21, 1
        %s631 = scalar_select %p630, %s21, 1
        %s632 = smul.addr %s631, 2
        %s633 = smul.addr %s632, 8
        %s634 = scalar_lea.vmem %s6, %s633
        // Predicated region
        $region98: #{x3d_head_forward.1} parent=80 // pred_check
          %p635 = pneg %p180
        $region99: #{x3d_head_forward.1} parent=80 // pred_check_branch
          %637 = sbr.rel (%p635) target = $region101
        $region100: #{x3d_head_forward.1} parent=80 // pred_region
          _
        $region101: #{x3d_head_forward.1} parent=80 // pred_fallthru
          _
      $region81: #{x3d_head_forward.1} parent=5 // pred_fallthru
        _
      %p638 = scmp.le.s32.totalorder 2, %s12
      // Predicated region
      $region102: #{x3d_head_forward.1} parent=5 // pred_check
        %p639 = pneg %p638
      $region103: #{x3d_head_forward.1} parent=5 // pred_check_branch
        %641 = sbr.rel (%p639) target = $region105
      $region104: #{x3d_head_forward.1} parent=5 // pred_region
        %s642 = ssub.s32 %s12, 2
        // Predicated region
        $region106: #{x3d_head_forward.1} parent=104 // pred_check
          %p643 = pneg %p186
        $region107: #{x3d_head_forward.1} parent=104 // pred_check_branch
          %645 = sbr.rel (%p643) target = $region109
        $region108: #{x3d_head_forward.1} parent=104 // pred_region
          %p646 = scmp.lt.s32.totalorder %s23, 1
          %s647 = scalar_select %p646, %s23, 1
          %s648 = smul.addr %s647, 2
          %s649 = smul.addr %s648, 8
          %s650 = scalar_lea.vmem %s6, %s649
        $region109: #{x3d_head_forward.1} parent=104 // pred_fallthru
          _
      $region105: #{x3d_head_forward.1} parent=5 // pred_fallthru
        _
    $region6: #{x3d_head_forward.1} parent=1 // loop_footer
      %s16 = sadd.s32 1, %s12
    $region7: #{x3d_head_forward.1} parent=1 // loop_footer_branch
      %11 = sbr.rel target = $region3
    $region8: #{x3d_head_forward.1} parent=1 // loop_exit
      _

</llo_original>
